<compile_context>
chip_gen: v7x
topology: tpu7x:2x2x1
jax: 0.10.0
libtpu: 0.0.40
codegen_flags: <defaults>
</compile_context>

<pallas_src>
import functools

import jax
import jax.numpy as jnp
from jax.experimental import pallas as pl
from jax.experimental.pallas import tpu as pltpu

BN_EPS = 1e-5


def pool_ctx_kernel(x_ref, w_hbm_ref, gamma_ref, beta_ref, o_ref,
                    h_acc_ref, w_vmem_ref, w_sem,
                    *, n_steps, seq_len, seq_tile, needs_mask):
    # x_ref:      (B, TS, D)  streamed slice of the input sequence (VMEM)
    # w_hbm_ref:  (D, H)      linear weight W.T, left in HBM (pl.ANY)
    # gamma_ref:  (1, H)      batchnorm weight (VMEM-resident)
    # beta_ref:   (1, H)      batchnorm bias   (VMEM-resident)
    # o_ref:      (B, H)      output (written once, at the last grid step)
    # h_acc_ref:  (B, D)      running-max accumulator (VMEM scratch)
    # w_vmem_ref: (D, H)      VMEM landing buffer for the weight
    # w_sem:      ()          DMA completion semaphore for the weight copy
    step = pl.program_id(0)
    last_step = n_steps - 1
    prefetch_step = max(n_steps - 2, 0)

    @pl.when(step == 0)
    def _init():
        h_acc_ref[...] = jnp.full_like(h_acc_ref, -jnp.inf)

    # Pull the weight HBM->VMEM one step before it is needed so the copy
    # overlaps with the final streamed x tile (it never eats the streaming
    # VMEM budget during the bulk of the loop).
    @pl.when(step == prefetch_step)
    def _start_weight_prefetch():
        pltpu.make_async_copy(w_hbm_ref, w_vmem_ref, w_sem).start()

    # Per-tile max over the streamed S slice.  Upcast once to f32 (no-op for
    # f32 inputs; required on v5e for bf16 streams), then an elementwise
    # running max against the accumulator.  VALU/XLU have huge slack under
    # the DMA, so the select/max work is effectively free.
    xv = x_ref[...].astype(jnp.float32)                          # (B, TS, D)
    if needs_mask:
        # Masked remainder tile: sequence rows past seq_len -> -inf.
        seq_idx = step * seq_tile + jax.lax.broadcasted_iota(
            jnp.int32, xv.shape, 1)
        xv = jnp.where(seq_idx < seq_len, xv, -jnp.inf)
    tile_max = jnp.max(xv, axis=1)                               # (B, D)
    h_acc_ref[...] = jnp.maximum(h_acc_ref[...], tile_max)

    @pl.when(step == last_step)
    def _finalize():
        pltpu.make_async_copy(w_hbm_ref, w_vmem_ref, w_sem).wait()
        h = h_acc_ref[...]                                       # (B, D)

        # Linear (MXU, f32 accumulate).  The nn.Linear bias is omitted: the
        # training-mode BatchNorm mean subtraction cancels it exactly.
        z = jnp.dot(h.astype(w_vmem_ref.dtype), w_vmem_ref[...],
                    preferred_element_type=jnp.float32)          # (B, H)

        # BatchNorm1d, training mode (batch mean, biased variance), with the
        # affine folded into one scale/shift; rsqrt runs on the EUP slot.
        mean = jnp.mean(z, axis=0, keepdims=True)                # (1, H)
        centered = z - mean
        var = jnp.mean(centered * centered, axis=0, keepdims=True)
        scale = gamma_ref[...] * jax.lax.rsqrt(var + BN_EPS)     # (1, H)
        y = centered * scale + beta_ref[...]

        # ReLU + single HBM writeback.
        o_ref[...] = jnp.maximum(y, 0.0).astype(o_ref.dtype)


def _vmem_capacity_bytes():
    """Physical VMEM per TensorCore (128 MiB v5e/v6e, 64 MiB v7x).

    Falls back to the smallest current generation (64 MiB) if the query is
    unavailable, so the budget is always physically realizable."""
    try:
        info = pltpu.get_tpu_info()
        cap = int(getattr(info, "vmem_capacity_bytes", 0) or 0)
        if cap > 0:
            return cap
    except Exception:
        pass
    return 64 * 1024 * 1024


def _pick_seq_tile(S, B, D, x_itemsize, stream_budget_bytes):
    """Largest sequence tile whose double-buffered (B, TS, D) slabs fit the
    streaming budget.  TS is a multiple of 8 (layout constraint) unless the
    whole sequence fits, in which case a single full-S tile is used (any
    remainder is handled by in-kernel masking, so TS need not divide S)."""
    per_row = 2 * B * D * x_itemsize            # two pipeline buffers per S row
    max_ts = max(stream_budget_bytes // per_row, 1)
    if max_ts >= S:
        return S                                # single whole-sequence tile
    return max(8, (max_ts // 8) * 8)


def pool_context_encoder(x, w, b, gamma, beta, *, seq_tile=None,
                         stream_dtype=None, weight_dtype=None):
    """x: (B, S, D); w: (H, D); b, gamma, beta: (H,).  Returns (B, H) f32.

    `b` is accepted for API parity with the PyTorch module but is not used:
    training-mode BatchNorm (batch statistics, the module's default forward)
    cancels the linear bias exactly.
    """
    del b  # mathematically cancelled by the BN batch-mean subtraction
    B, S, D = x.shape
    H = w.shape[0]

    if stream_dtype is not None:
        x = x.astype(stream_dtype)              # e.g. bf16 stream: halves HBM bytes
    x_itemsize = x.dtype.itemsize

    wt = jnp.transpose(w)                       # (D, H) — glue only
    if weight_dtype is not None:
        wt = wt.astype(weight_dtype)
    w_itemsize = wt.dtype.itemsize
    g2 = gamma.reshape(1, H).astype(jnp.float32)
    be2 = beta.reshape(1, H).astype(jnp.float32)

    # --- Generation-aware VMEM budgeting -----------------------------------
    cap = _vmem_capacity_bytes()
    headroom = 8 << 20                          # compiler / internal scratch
    resident = (D * H * w_itemsize              # weight landing buffer (1 copy)
                + B * D * 4                     # running-max accumulator
                + 2 * B * H * 4                 # output block
                + 2 * 2 * (2 * H) * 4           # gamma/beta (double-buffered)
                + 8 * B * max(D, H) * 4)        # epilogue temporaries margin
    stream_budget = max(cap - headroom - resident, 2 * 8 * B * D * x_itemsize)

    if seq_tile is not None:
        ts = seq_tile
        assert ts == S or ts % 8 == 0, "seq_tile must be a multiple of 8 (or S)"
    else:
        ts = _pick_seq_tile(S, B, D, x_itemsize, stream_budget)
    n_steps = pl.cdiv(S, ts)
    needs_mask = (S % ts) != 0

    vmem_limit = 2 * B * ts * D * x_itemsize + resident + (4 << 20)
    vmem_limit = int(min(max(vmem_limit, 16 << 20), cap))

    # Advisory cost so XLA overlaps this long, memory-bound call.
    cost = pl.CostEstimate(
        flops=B * S * D + 2 * B * D * H + 10 * B * H,
        transcendentals=H,
        bytes_accessed=(B * S * D * x_itemsize + D * H * w_itemsize
                        + 4 * H * 4 + B * H * 4),
    )

    kernel = functools.partial(pool_ctx_kernel, n_steps=int(n_steps),
                               seq_len=S, seq_tile=ts, needs_mask=needs_mask)

    return pl.pallas_call(
        kernel,
        out_shape=jax.ShapeDtypeStruct((B, H), jnp.float32),
        grid_spec=pltpu.PrefetchScalarGridSpec(
            num_scalar_prefetch=0,
            grid=(int(n_steps),),
            in_specs=[
                # streamed S tiles of x (double-buffered by the pipeline)
                pl.BlockSpec((B, ts, D), lambda s: (0, s, 0)),
                # linear weight stays in HBM; manually DMA'd near the end
                pl.BlockSpec(memory_space=pl.ANY),
                # tiny BN params, constant block index -> VMEM-resident
                pl.BlockSpec((1, H), lambda s: (0, 0)),
                pl.BlockSpec((1, H), lambda s: (0, 0)),
            ],
            # constant block index -> output kept resident, one HBM writeback
            out_specs=pl.BlockSpec((B, H), lambda s: (0, 0)),
            scratch_shapes=[
                pltpu.VMEM((B, D), jnp.float32),   # running-max accumulator
                pltpu.VMEM((D, H), wt.dtype),      # weight landing buffer
                pltpu.SemaphoreType.DMA(()),       # weight DMA semaphore
            ],
        ),
        compiler_params=pltpu.CompilerParams(
            dimension_semantics=("arbitrary",),    # S is a reduction axis
            vmem_limit_bytes=vmem_limit,
        ),
        cost_estimate=cost,
    )(x, wt, g2, be2)


if __name__ == "__main__":
    # Small shapes consistent with the module (input_size -> D, hidden_size -> H).
    # S=40 with seq_tile=16 exercises the multi-step streamed path AND the
    # masked remainder tile (40 = 16 + 16 + 8-valid-of-16).
    B, S, D, H = 8, 40, 256, 256

    key = jax.random.PRNGKey(0)
    kx, kw, kb = jax.random.split(key, 3)

    x = jax.random.normal(kx, (B, S, D), dtype=jnp.float32)

    # Deterministic parameter init mirroring the module's __init__:
    #   linear.weight ~ N(0, 0.01), linear.bias ~ U(-1/sqrt(D), 1/sqrt(D))
    #   bn.weight = 1, bn.bias = 0
    w = 0.01 * jax.random.normal(kw, (H, D), dtype=jnp.float32)
    bound = 1.0 / (D ** 0.5)
    b = jax.random.uniform(kb, (H,), minval=-bound, maxval=bound,
                           dtype=jnp.float32)
    gamma = jnp.ones((H,), dtype=jnp.float32)
    beta = jnp.zeros((H,), dtype=jnp.float32)

    # Reference in plain JAX — same math as the PyTorch forward (bias included;
    # it is cancelled by the BN batch-mean subtraction, so results match).
    h_ref = jnp.max(x, axis=1)
    z_ref = h_ref @ w.T + b
    m = jnp.mean(z_ref, axis=0, keepdims=True)
    v = jnp.mean((z_ref - m) ** 2, axis=0, keepdims=True)
    ref = jnp.maximum((z_ref - m) / jnp.sqrt(v + BN_EPS) * gamma + beta, 0.0)

    # Multi-step streamed path with a masked remainder tile.
    out_tiled = pool_context_encoder(x, w, b, gamma, beta, seq_tile=16)
    out_tiled = jax.block_until_ready(out_tiled)
    assert out_tiled.shape == (B, H)
    assert jnp.allclose(out_tiled, ref, atol=1e-4, rtol=1e-4)

    # Auto-tiled path (VMEM budget easily covers S -> single full-sequence tile).
    out_auto = pool_context_encoder(x, w, b, gamma, beta)
    out_auto = jax.block_until_ready(out_auto)
    assert jnp.allclose(out_auto, ref, atol=1e-4, rtol=1e-4)

    print("KERNEL_OK")
</pallas_src>

<mosaic_0001>
module attributes {stable_mosaic.version = 11 : i64} {
  func.func @pool_ctx_kernel(%arg0: i32, %arg1: memref<8x16x256xf32, #tpu.memory_space<vmem>>, %arg2: memref<256x256xf32, #tpu.memory_space<any>>, %arg3: memref<1x256xf32, #tpu.memory_space<vmem>>, %arg4: memref<1x256xf32, #tpu.memory_space<vmem>>, %arg5: memref<8x256xf32, #tpu.memory_space<vmem>>, %arg6: memref<8x256xf32, #tpu.memory_space<vmem>>, %arg7: memref<256x256xf32, #tpu.memory_space<vmem>>, %arg8: memref<!tpu.dma_semaphore, #tpu.memory_space<semaphore_mem>>) attributes {dimension_semantics = [#tpu.dimension_semantics<arbitrary>], iteration_bounds = array<i64: 3>, scalar_prefetch = 0 : i64, scratch_operands = 3 : i64, tpu.core_type = #tpu.core_type<tc>, window_params = [{transform_indices = @transform_0, window_bounds = array<i64: 8, 16, 256>}, {}, {pipeline_mode = #tpu.pipeline_mode<synchronous>, transform_indices = @transform_2, window_bounds = array<i64: 1, 256>}, {pipeline_mode = #tpu.pipeline_mode<synchronous>, transform_indices = @transform_3, window_bounds = array<i64: 1, 256>}, {pipeline_mode = #tpu.pipeline_mode<synchronous>, transform_indices = @transform_4, window_bounds = array<i64: 8, 256>}]} {
    %c0_i32 = arith.constant 0 : i32
    %0 = arith.cmpi eq, %arg0, %c0_i32 : i32
    %1 = arith.extui %0 : i1 to i32
    %c0_i32_0 = arith.constant 0 : i32
    %2 = arith.cmpi ne, %1, %c0_i32_0 : i32
    scf.if %2 {
      %cst_10 = arith.constant 0xFF800000 : f32
      %22 = vector.broadcast %cst_10 : f32 to vector<8x256xf32>
      %c0_11 = arith.constant 0 : index
      %c0_12 = arith.constant 0 : index
      %23 = vector.load %arg6[%c0_11, %c0_12] : memref<8x256xf32, #tpu.memory_space<vmem>>, vector<8x256xf32>
      tpu.vector_store %arg6[%c0_11, %c0_12], %22 {strides = array<i32>} : memref<8x256xf32, #tpu.memory_space<vmem>>, vector<8x256xf32>,
    } else {
    }
    %c1_i32 = arith.constant 1 : i32
    %3 = arith.cmpi eq, %arg0, %c1_i32 : i32
    %4 = arith.extui %3 : i1 to i32
    %c0_i32_1 = arith.constant 0 : i32
    %5 = arith.cmpi ne, %4, %c0_i32_1 : i32
    scf.if %5 {
      tpu.enqueue_dma source(%arg2 : memref<256x256xf32, #tpu.memory_space<any>>) target(%arg7 : memref<256x256xf32, #tpu.memory_space<vmem>>) target_semaphore(%arg8 : memref<!tpu.dma_semaphore, #tpu.memory_space<semaphore_mem>>)
    } else {
    }
    %c0 = arith.constant 0 : index
    %c0_2 = arith.constant 0 : index
    %c0_3 = arith.constant 0 : index
    %6 = vector.load %arg1[%c0, %c0_2, %c0_3] : memref<8x16x256xf32, #tpu.memory_space<vmem>>, vector<8x16x256xf32>
    %c16_i32 = arith.constant 16 : i32
    %7 = arith.muli %arg0, %c16_i32 : i32
    %8 = tpu.iota {dimensions = array<i32: 1>} : vector<8x16x256xi32>
    %9 = vector.broadcast %7 : i32 to vector<8x16x256xi32>
    %10 = arith.addi %9, %8 : vector<8x16x256xi32>
    %c40_i32 = arith.constant 40 : i32
    %11 = vector.broadcast %c40_i32 : i32 to vector<8x16x256xi32>
    %12 = arith.cmpi slt, %10, %11 : vector<8x16x256xi32>
    %cst = arith.constant 0xFF800000 : f32
    %13 = vector.broadcast %cst : f32 to vector<8x16x256xf32>
    %14 = arith.select %12, %6, %13 : vector<8x16x256xi1>, vector<8x16x256xf32>
    %cst_4 = arith.constant dense<0xFF800000> : vector<8x256xf32>
    %15 = vector.multi_reduction <maximumf>, %14, %cst_4 [1] : vector<8x16x256xf32> to vector<8x256xf32>
    %c0_5 = arith.constant 0 : index
    %c0_6 = arith.constant 0 : index
    %16 = vector.load %arg6[%c0_5, %c0_6] : memref<8x256xf32, #tpu.memory_space<vmem>>, vector<8x256xf32>
    %17 = arith.maximumf %16, %15 : vector<8x256xf32>
    %c0_7 = arith.constant 0 : index
    %c0_8 = arith.constant 0 : index
    %18 = vector.load %arg6[%c0_7, %c0_8] : memref<8x256xf32, #tpu.memory_space<vmem>>, vector<8x256xf32>
    tpu.vector_store %arg6[%c0_7, %c0_8], %17 {strides = array<i32>} : memref<8x256xf32, #tpu.memory_space<vmem>>, vector<8x256xf32>,
    %c2_i32 = arith.constant 2 : i32
    %19 = arith.cmpi eq, %arg0, %c2_i32 : i32
    %20 = arith.extui %19 : i1 to i32
    %c0_i32_9 = arith.constant 0 : i32
    %21 = arith.cmpi ne, %20, %c0_i32_9 : i32
    scf.if %21 {
      tpu.wait_dma2 semaphore(%arg8 : memref<!tpu.dma_semaphore, #tpu.memory_space<semaphore_mem>>) src(%arg2 : memref<256x256xf32, #tpu.memory_space<any>>) dst(%arg7 : memref<256x256xf32, #tpu.memory_space<vmem>>)
      %c0_10 = arith.constant 0 : index
      %c0_11 = arith.constant 0 : index
      %22 = vector.load %arg6[%c0_10, %c0_11] : memref<8x256xf32, #tpu.memory_space<vmem>>, vector<8x256xf32>
      %c0_12 = arith.constant 0 : index
      %c0_13 = arith.constant 0 : index
      %23 = vector.load %arg7[%c0_12, %c0_13] : memref<256x256xf32, #tpu.memory_space<vmem>>, vector<256x256xf32>
      %cst_14 = arith.constant dense<0.000000e+00> : vector<8x256xf32>
      %24 = tpu.matmul %22, %23, %cst_14 {dimension_numbers = #tpu.dot_dimension_numbers<[1], [0], [0], [1], [0, 0, 1, 1], [], []>} : vector<8x256xf32>, vector<256x256xf32>, vector<8x256xf32> -> vector<8x256xf32>
      %cst_15 = arith.constant dense<0.000000e+00> : vector<256xf32>
      %25 = vector.multi_reduction <add>, %24, %cst_15 [0] : vector<8x256xf32> to vector<256xf32>
      %26 = vector.shape_cast %25 : vector<256xf32> to vector<1x256xf32>
      %cst_16 = arith.constant 8.000000e+00 : f32
      %27 = vector.broadcast %cst_16 : f32 to vector<1x256xf32>
      %28 = arith.divf %26, %27 : vector<1x256xf32>
      %29 = vector.broadcast %28 : vector<1x256xf32> to vector<8x256xf32>
      %30 = arith.subf %24, %29 : vector<8x256xf32>
      %31 = arith.mulf %30, %30 : vector<8x256xf32>
      %cst_17 = arith.constant dense<0.000000e+00> : vector<256xf32>
      %32 = vector.multi_reduction <add>, %31, %cst_17 [0] : vector<8x256xf32> to vector<256xf32>
      %33 = vector.shape_cast %32 : vector<256xf32> to vector<1x256xf32>
      %cst_18 = arith.constant 8.000000e+00 : f32
      %34 = vector.broadcast %cst_18 : f32 to vector<1x256xf32>
      %35 = arith.divf %33, %34 : vector<1x256xf32>
      %c0_19 = arith.constant 0 : index
      %c0_20 = arith.constant 0 : index
      %36 = vector.load %arg3[%c0_19, %c0_20] : memref<1x256xf32, #tpu.memory_space<vmem>>, vector<1x256xf32>
      %cst_21 = arith.constant 9.99999974E-6 : f32
      %37 = vector.broadcast %cst_21 : f32 to vector<1x256xf32>
      %38 = arith.addf %35, %37 : vector<1x256xf32>
      %39 = math.rsqrt %38 : vector<1x256xf32>
      %40 = arith.mulf %36, %39 : vector<1x256xf32>
      %41 = vector.broadcast %40 : vector<1x256xf32> to vector<8x256xf32>
      %42 = arith.mulf %30, %41 : vector<8x256xf32>
      %c0_22 = arith.constant 0 : index
      %c0_23 = arith.constant 0 : index
      %43 = vector.load %arg4[%c0_22, %c0_23] : memref<1x256xf32, #tpu.memory_space<vmem>>, vector<1x256xf32>
      %44 = vector.broadcast %43 : vector<1x256xf32> to vector<8x256xf32>
      %45 = arith.addf %42, %44 : vector<8x256xf32>
      %cst_24 = arith.constant 0.000000e+00 : f32
      %46 = vector.broadcast %cst_24 : f32 to vector<8x256xf32>
      %47 = arith.maximumf %45, %46 : vector<8x256xf32>
      %c0_25 = arith.constant 0 : index
      %c0_26 = arith.constant 0 : index
      %48 = vector.load %arg5[%c0_25, %c0_26] : memref<8x256xf32, #tpu.memory_space<vmem>>, vector<8x256xf32>
      tpu.vector_store %arg5[%c0_25, %c0_26], %47 {strides = array<i32>} : memref<8x256xf32, #tpu.memory_space<vmem>>, vector<8x256xf32>,
    } else {
    }
    return
  }
  func.func @transform_0(%arg0: i32) -> (i32, i32, i32) {
    %c0_i32 = arith.constant 0 : i32
    %c0_i32_0 = arith.constant 0 : i32
    %c0_i32_1 = arith.constant 0 : i32
    return %c0_i32, %arg0, %c0_i32_0 : i32, i32, i32
  }
  func.func @transform_2(%arg0: i32) -> (i32, i32) {
    %c0_i32 = arith.constant 0 : i32
    %c0_i32_0 = arith.constant 0 : i32
    %c0_i32_1 = arith.constant 0 : i32
    return %c0_i32, %c0_i32_0 : i32, i32
  }
  func.func @transform_3(%arg0: i32) -> (i32, i32) {
    %c0_i32 = arith.constant 0 : i32
    %c0_i32_0 = arith.constant 0 : i32
    %c0_i32_1 = arith.constant 0 : i32
    return %c0_i32, %c0_i32_0 : i32, i32
  }
  func.func @transform_4(%arg0: i32) -> (i32, i32) {
    %c0_i32 = arith.constant 0 : i32
    %c0_i32_0 = arith.constant 0 : i32
    %c0_i32_1 = arith.constant 0 : i32
    return %c0_i32, %c0_i32_0 : i32, i32
  }
}

</mosaic_0001>

<llo_original>
// kernel: tpu_custom_call.1
$region0: #{tpu_custom_call.1}
  #allocation0 [shape = 'u32[]', space=smem, size = 0x4, offset = 0x4, fixed_abs, tag = 'smem constant byte address 0x4 - core index']
  #allocation1 [shape = 'u32[144,128]{1,0:T(1,128)}', space=vmem, size = 0x12000, scoped, tag = 'internal scratch']
  #allocation2 [shape = 'f32[8,256]{1,0:T(8,128)}', space=vmem, size = 0x2000, scoped, tag = 'scratch operand']
  #allocation3 [shape = 'f32[256,256]{1,0:T(8,128)}', space=vmem, size = 0x40000, scoped, tag = 'scratch operand']
  #allocation4 [shape = 's32[1]{0}', space=sflag, size = 0x4, scoped, tag = 'scratch operand']
  #allocation9 [shape = 's32[]', space=sflag, size = 0x4, offset = 0, fixed_abs, tag = 'sflag constant byte address 0x0 - dummy sync flag']
  #allocation11 [shape = 's32[]', space=sflag, size = 0x4, offset = 0, fixed_abs, tag = 'sflag constant byte address 0x0 - dummy sync flag']
  #allocation12 [shape = 's32[]', space=sflag, size = 0x4, offset = 0, fixed_abs, tag = 'sflag constant byte address 0x0 - dummy sync flag']
  #allocation13 [shape = 'u32[]', space=smem, size = 0x4, offset = 0x44, fixed_abs, tag = 'smem constant byte address 0x44 - assertion arg 0']
  #allocation14 [shape = 'u32[]', space=smem, size = 0x4, offset = 0x48, fixed_abs, tag = 'smem constant byte address 0x48 - assertion arg 1']
  %s0 = inlined_call_operand.hbm [shape: f32[8,40,256], index: 0, kind: input, shape index: {}]
  %s1 = inlined_call_operand.hbm [shape: f32[256,256], index: 1, kind: input, shape index: {}]
  %s2 = inlined_call_operand.vmem [shape: f32[1,256], index: 2, kind: input, shape index: {}]
  %s3 = inlined_call_operand.vmem [shape: f32[1,256], index: 3, kind: input, shape index: {}]
  %s4 = inlined_call_operand.hbm [shape: f32[8,256], index: 4, kind: output, shape index: {}]
  %s5 = sld [smem:[#allocation0]]
  $region65: #{tpu_custom_call.1} parent=0
    _
  %s7 = ssub.s32 1, %s5
  %s8 = scalar_select 0, %s7, %s5
  $region1: #{tpu_custom_call.1} parent=0
    #allocation5 [shape = 'u8[262144]{0}', space=vmem, size = 0x40000, scoped, tag = 'input window, operand 0']
    #allocation6 [shape = 's32[2]{0}', space=sflag, size = 0x8, scoped, tag = 'scoped memory for tpu_custom_call.1']
    #allocation7 [shape = 's32[2]{0}', space=sflag, size = 0x8, scoped, tag = 'scoped memory for tpu_custom_call.1']
    #allocation8 [shape = 'u8[8192]{0}', space=vmem, size = 0x2000, scoped, tag = 'output window, operand 0, single buffered']
    %9 = vsyncpa [#allocation6], 0
    %s10 = scalar_lea.sflag [#allocation6], 1
    %11 = vsyncpa %s10, 0
    %12 = vsyncpa [#allocation7], 0
    loop: start=0, step=1, limit=5
    $region2: #{tpu_custom_call.1} parent=1 // loop_pre_header
      _
    $region3: #{tpu_custom_call.1} parent=1 // loop_header
      %s14 = sphi 0, %s18
      %p15 = scmp.ge.s32.totalorder %s14, 5
      %s24 = sphi 0, %s26
      %s27 = sphi 0, %s24
      %s28 = sphi 0, %s27
      %s44 = sphi 0, %s28
      %s48 = sphi 0, %s48
      %s50 = sphi 0, %s48
      %s51 = sphi 0, %s50
      %s65 = sphi 0, %s51
      %s69 = sphi 0, %s69
      %s71 = sphi 0, %s69
      %s72 = sphi 0, %s71
      %s86 = sphi 0, %s72
      %s90 = sphi 0, %s90
      %s92 = sphi 0, %s90
      %s93 = sphi 0, %s92
      %s107 = sphi 0, %s93
    $region4: #{tpu_custom_call.1} parent=1 // loop_header_branch
      %17 = sbr.rel (%p15) target = $region8
    $region5: #{tpu_custom_call.1} parent=1 // loop_body
      %s19 = ssub.s32 %s14, 1
      %s20 = ssub.s32 %s14, 2
      %s21 = sadd.s32 %s14, 1
      %s22 = ssub.s32 %s14, %s21
      %p23 = scmp.eq.s32.totalorder %s22, 0
      %s25 = sadd.s32 %s24, 1
      %s26 = scalar_select %p23, %s24, %s25
      %p29 = pneg %p23
      %p30 = scmp.eq.s32.totalorder %s14, 2
      %p31 = por %p29, %p30
      %p32 = scmp.ne.s32.totalorder %s24, %s27
      %p33 = scmp.eq.s32.totalorder %s14, 0
      %p34 = por %p32, %p33
      %p35 = scmp.ne.s32.totalorder %s24, %s27
      %p36 = scmp.eq.s32.totalorder %s19, 2
      %p37 = por %p35, %p36
      %p38 = scmp.ne.s32.totalorder %s27, %s28
      %p39 = scmp.eq.s32.totalorder %s19, 0
      %p40 = por %p38, %p39
      %p41 = scmp.ne.s32.totalorder %s27, %s28
      %p42 = scmp.eq.s32.totalorder %s20, 2
      %p43 = por %p41, %p42
      %p45 = scmp.ne.s32.totalorder %s28, %s44
      %p46 = scmp.eq.s32.totalorder %s20, 0
      %p47 = por %p45, %p46
      %s49 = sadd.s32 %s48, 1
      %p52 = scmp.eq.s32.totalorder %s14, 2
      %p53 = scmp.ne.s32.totalorder %s48, %s50
      %p54 = scmp.eq.s32.totalorder %s14, 0
      %p55 = por %p53, %p54
      %p56 = scmp.ne.s32.totalorder %s48, %s50
      %p57 = scmp.eq.s32.totalorder %s19, 2
      %p58 = por %p56, %p57
      %p59 = scmp.ne.s32.totalorder %s50, %s51
      %p60 = scmp.eq.s32.totalorder %s19, 0
      %p61 = por %p59, %p60
      %p62 = scmp.ne.s32.totalorder %s50, %s51
      %p63 = scmp.eq.s32.totalorder %s20, 2
      %p64 = por %p62, %p63
      %p66 = scmp.ne.s32.totalorder %s51, %s65
      %p67 = scmp.eq.s32.totalorder %s20, 0
      %p68 = por %p66, %p67
      %s70 = sadd.s32 %s69, 1
      %p73 = scmp.eq.s32.totalorder %s14, 2
      %p74 = scmp.ne.s32.totalorder %s69, %s71
      %p75 = scmp.eq.s32.totalorder %s14, 0
      %p76 = por %p74, %p75
      %p77 = scmp.ne.s32.totalorder %s69, %s71
      %p78 = scmp.eq.s32.totalorder %s19, 2
      %p79 = por %p77, %p78
      %p80 = scmp.ne.s32.totalorder %s71, %s72
      %p81 = scmp.eq.s32.totalorder %s19, 0
      %p82 = por %p80, %p81
      %p83 = scmp.ne.s32.totalorder %s71, %s72
      %p84 = scmp.eq.s32.totalorder %s20, 2
      %p85 = por %p83, %p84
      %p87 = scmp.ne.s32.totalorder %s72, %s86
      %p88 = scmp.eq.s32.totalorder %s20, 0
      %p89 = por %p87, %p88
      %s91 = sadd.s32 %s90, 1
      %p94 = scmp.eq.s32.totalorder %s14, 2
      %p95 = scmp.ne.s32.totalorder %s90, %s92
      %p96 = scmp.eq.s32.totalorder %s14, 0
      %p97 = por %p95, %p96
      %p98 = scmp.ne.s32.totalorder %s90, %s92
      %p99 = scmp.eq.s32.totalorder %s19, 2
      %p100 = por %p98, %p99
      %p101 = scmp.ne.s32.totalorder %s92, %s93
      %p102 = scmp.eq.s32.totalorder %s19, 0
      %p103 = por %p101, %p102
      %p104 = scmp.ne.s32.totalorder %s92, %s93
      %p105 = scmp.eq.s32.totalorder %s20, 2
      %p106 = por %p104, %p105
      %p108 = scmp.ne.s32.totalorder %s93, %s107
      %p109 = scmp.eq.s32.totalorder %s20, 0
      %p110 = por %p108, %p109
      %p111 = scmp.le.s32.totalorder 1, %s14
      %p112 = scmp.lt.s32.totalorder %s14, 4
      %p113 = pnand %p111, %p112
      %p114 = pneg %p113
      // Predicated region
      $region9: #{tpu_custom_call.1} parent=5 // pred_check
        _
      $region10: #{tpu_custom_call.1} parent=5 // pred_check_branch
        %116 = sbr.rel (%p113) target = $region12
      $region11: #{tpu_custom_call.1} parent=5 // pred_region
        %s117 = ssub.s32 %s14, 1
        // Predicated region
        $region13: #{tpu_custom_call.1} parent=11 // pred_check
          %p118 = pneg %p61
        $region14: #{tpu_custom_call.1} parent=11 // pred_check_branch
          %120 = sbr.rel (%p118) target = $region16
        $region15: #{tpu_custom_call.1} parent=11 // pred_region
          _
        $region16: #{tpu_custom_call.1} parent=11 // pred_fallthru
          _
        // Predicated region
        $region17: #{tpu_custom_call.1} parent=11 // pred_check
          %p121 = pneg %p82
        $region18: #{tpu_custom_call.1} parent=11 // pred_check_branch
          %123 = sbr.rel (%p121) target = $region20
        $region19: #{tpu_custom_call.1} parent=11 // pred_region
          _
        $region20: #{tpu_custom_call.1} parent=11 // pred_fallthru
          _
      $region12: #{tpu_custom_call.1} parent=5 // pred_fallthru
        _
      %p124 = scmp.lt.s32.totalorder %s14, 3
      // Predicated region
      $region21: #{tpu_custom_call.1} parent=5 // pred_check
        %p125 = pneg %p124
      $region22: #{tpu_custom_call.1} parent=5 // pred_check_branch
        %127 = sbr.rel (%p125) target = $region24
      $region23: #{tpu_custom_call.1} parent=5 // pred_region
        // Predicated region
        $region25: #{tpu_custom_call.1} parent=23 // pred_check
          %p128 = pneg %p34
        $region26: #{tpu_custom_call.1} parent=23 // pred_check_branch
          %130 = sbr.rel (%p128) target = $region28
        $region27: #{tpu_custom_call.1} parent=23 // pred_region
          #allocation10 [shape = 'u32[6]{0}', space=smem, size = 0x18, scoped, tag = 'DMA stride descriptor']
          %s131 = sand.u32 %s24, 1
          %s132 = scalar_lea.sflag [#allocation6], %s131
          %s133 = sand.u32 %s24, 1
          %s134 = smul.addr %s133, 256
          %s135 = scalar_lea.vmem [#allocation5], %s134
          %s136 = smul.u32 2, %s14
          %s137 = ssub.s32 5, %s136
          %p138 = scmp.lt.s32.totalorder %s137, 2
          %s139 = scalar_select %p138, %s137, 2
          %s140 = smul.u32 1024, %s139
          %s141 = smul.u32 %s140, 2
          %s143 = ssub.s32 4096, %s141
          %144 = vsyncadd %s132, %s143
          %p145 = scmp.ne.s32.totalorder 0, %s141
          %s146 = smul.addr %s136, 2
          %s147 = smul.addr %s146, 128
          %s148 = scalar_lea.hbm %s0, %s147
          %s149 = smul.u32 16, %s139
          %s150 = smul.u32 %s149, 8
          %s152 = sshll.u32 1, 14
          %s153 = sxor.u32 4294967295, %s152
          %s155 = sld [smem:[#allocation0]]
          %s156 = sadd.s32 2, %s155
          %s158 = sshll.u32 7, 26
          %s159 = sxor.u32 4294967295, %s158
          %s160 = sand.u32 0, %s159
          %s161 = sshll.u32 %s156, 26
          %s162 = sor.u32 %s160, %s161
          %s163 = sshll.u32 %s135, 4
          %s164 = int_to_ptr.vmem [resolvable:$true] %s163
          %s165 = sshll.u32 %s150, 4
          %170 = sst [smem:[#allocation10]] 1280
          %s171 = scalar_lea.smem [#allocation10], 1
          %172 = sst [smem:[%s171]] 512
          %s173 = scalar_lea.smem [#allocation10], 2
          %174 = sst [smem:[%s173]] %s139
          %s175 = scalar_lea.smem [#allocation10], 3
          %176 = sst [smem:[%s175]] 256
          %s177 = scalar_lea.smem [#allocation10], 4
          %178 = sst [smem:[%s177]] 256
          %s179 = scalar_lea.smem [#allocation10], 5
          %180 = sst [smem:[%s179]] 16
          %182 = dma.general (%p145), %s148, %s165, %s164, %s132, [#allocation9], [#allocation10], %s162, 0
        $region28: #{tpu_custom_call.1} parent=23 // pred_fallthru
          _
      $region24: #{tpu_custom_call.1} parent=5 // pred_fallthru
        _
      %p183 = scmp.le.s32.totalorder 1, %s14
      %p184 = scmp.lt.s32.totalorder %s14, 4
      %p185 = pnand %p183, %p184
      %p186 = pneg %p185
      // Predicated region
      $region29: #{tpu_custom_call.1} parent=5 // pred_check
        _
      $region30: #{tpu_custom_call.1} parent=5 // pred_check_branch
        %188 = sbr.rel (%p185) target = $region32
      $region31: #{tpu_custom_call.1} parent=5 // pred_region
        %s189 = ssub.s32 %s14, 1
        %s190 = sand.u32 %s27, 1
        %s191 = scalar_lea.sflag [#allocation6], %s190
        %s192 = sand.u32 %s27, 1
        %s193 = smul.addr %s192, 256
        %s194 = scalar_lea.vmem [#allocation5], %s193
        // Predicated region
        $region33: #{tpu_custom_call.1} parent=31 // pred_check
          %p195 = pneg %p40
        $region34: #{tpu_custom_call.1} parent=31 // pred_check_branch
          %197 = sbr.rel (%p195) target = $region36
        $region35: #{tpu_custom_call.1} parent=31 // pred_region
          %198 = dma.done %s191, 4096
        $region36: #{tpu_custom_call.1} parent=31 // pred_fallthru
          _
        %s199 = sand.u32 %s27, 1
        %s200 = scalar_lea.sflag [#allocation6], %s199
        %s201 = sand.u32 %s27, 1
        %s202 = smul.addr %s201, 256
        %s203 = scalar_lea.vmem [#allocation5], %s202
        %p204 = pneg %p40
        %p205 = pneg %p37
        %p206 = pneg %p61
        %p207 = pneg %p58
        %p208 = pneg %p82
        %p209 = pneg %p79
        %p210 = pneg %p103
        %p211 = pneg %p100
        %s212 = smul.u32 2, %s19
        %s213 = ssub.s32 5, %s212
        %p214 = scmp.lt.s32.totalorder %s213, 2
        %s215 = scalar_select %p214, %s213, 2
        %s216 = smul.u32 1024, %s215
        %s217 = smul.u32 %s216, 2
        %p218 = scmp.eq.s32.totalorder %s19, 0
        // Predicated region
        $region37: #{tpu_custom_call.1} parent=31 // pred_check
          %p219 = pneg %p218
        $region38: #{tpu_custom_call.1} parent=31 // pred_check_branch
          %221 = sbr.rel (%p219) target = $region40
        $region39: #{tpu_custom_call.1} parent=31 // pred_region
          %222 = vst [vmem:[#allocation2] sm:$0xff] -inf
          %223 = vst [vmem:[#allocation2 + $0x8] sm:$0xff] -inf
        $region40: #{tpu_custom_call.1} parent=31 // pred_fallthru
          _
        %p224 = scmp.eq.s32.totalorder %s19, 1
        // Predicated region
        $region41: #{tpu_custom_call.1} parent=31 // pred_check
          %p225 = pneg %p224
        $region42: #{tpu_custom_call.1} parent=31 // pred_check_branch
          %227 = sbr.rel (%p225) target = $region44
        $region43: #{tpu_custom_call.1} parent=31 // pred_region
          // Predicated region
          $region45: #{tpu_custom_call.1} parent=43 // pred_check
            _
          $region46: #{tpu_custom_call.1} parent=43 // pred_check_branch
            %229 = sbr.rel target = $region48
          $region47: #{tpu_custom_call.1} parent=43 // pred_region
            %230 = sst [smem:[#allocation13]] [#allocation12]
            %231 = sst [smem:[#allocation14]] [#allocation11]
          $region48: #{tpu_custom_call.1} parent=43 // pred_fallthru
            _
          %233 = shalt.err (0)
          %s235 = sshll.u32 [#allocation3], 4
          %s236 = int_to_ptr.vmem [resolvable:$true] %s235
          %238 = dma.hbm_to_vmem [thread:$0]  %s1, 8192, %s236, [#allocation4]
        $region44: #{tpu_custom_call.1} parent=31 // pred_fallthru
          _
        %v239 = vld [vmem:[%s194] sm:$0xff]
        %v240 = vld [vmem:[%s194 + $0x8] sm:$0xff]
        %v241 = vld [vmem:[%s194 + $0x10] sm:$0xff]
        %v242 = vld [vmem:[%s194 + $0x18] sm:$0xff]
        %v243 = vld [vmem:[%s194 + $0x20] sm:$0xff]
        %v244 = vld [vmem:[%s194 + $0x28] sm:$0xff]
        %v245 = vld [vmem:[%s194 + $0x30] sm:$0xff]
        %v246 = vld [vmem:[%s194 + $0x38] sm:$0xff]
        %v247 = vld [vmem:[%s194 + $0x40] sm:$0xff]
        %v248 = vld [vmem:[%s194 + $0x48] sm:$0xff]
        %v249 = vld [vmem:[%s194 + $0x50] sm:$0xff]
        %v250 = vld [vmem:[%s194 + $0x58] sm:$0xff]
        %v251 = vld [vmem:[%s194 + $0x60] sm:$0xff]
        %v252 = vld [vmem:[%s194 + $0x68] sm:$0xff]
        %v253 = vld [vmem:[%s194 + $0x70] sm:$0xff]
        %v254 = vld [vmem:[%s194 + $0x78] sm:$0xff]
        %v255 = vld [vmem:[%s194 + $0x80] sm:$0xff]
        %v256 = vld [vmem:[%s194 + $0x88] sm:$0xff]
        %v257 = vld [vmem:[%s194 + $0x90] sm:$0xff]
        %v258 = vld [vmem:[%s194 + $0x98] sm:$0xff]
        %v259 = vld [vmem:[%s194 + $0xa0] sm:$0xff]
        %v260 = vld [vmem:[%s194 + $0xa8] sm:$0xff]
        %v261 = vld [vmem:[%s194 + $0xb0] sm:$0xff]
        %v262 = vld [vmem:[%s194 + $0xb8] sm:$0xff]
        %v263 = vld [vmem:[%s194 + $0xc0] sm:$0xff]
        %v264 = vld [vmem:[%s194 + $0xc8] sm:$0xff]
        %v265 = vld [vmem:[%s194 + $0xd0] sm:$0xff]
        %v266 = vld [vmem:[%s194 + $0xd8] sm:$0xff]
        %v267 = vld [vmem:[%s194 + $0xe0] sm:$0xff]
        %v268 = vld [vmem:[%s194 + $0xe8] sm:$0xff]
        %v269 = vld [vmem:[%s194 + $0xf0] sm:$0xff]
        %v270 = vld [vmem:[%s194 + $0xf8] sm:$0xff]
        %s271 = smul.u32 %s19, 16
        %v272 = vlaneseq
        %v273 = vshrl.u32 %v272, 7
        %v274 = vadd.s32 %v273, 8
        %v275 = vstv %s271
        %v276 = vadd.s32 %v275, %v273
        %v277 = vadd.s32 %v275, %v274
        %vm278 = vcmp.lt.s32.totalorder %v276, 40
        %vm279 = vcmp.lt.s32.totalorder %v277, 40
        %v280 = vsel %vm278, %v239, -inf
        %v281 = vsel %vm278, %v240, -inf
        %v282 = vsel %vm279, %v241, -inf
        %v283 = vsel %vm279, %v242, -inf
        %v284 = vsel %vm278, %v243, -inf
        %v285 = vsel %vm278, %v244, -inf
        %v286 = vsel %vm279, %v245, -inf
        %v287 = vsel %vm279, %v246, -inf
        %v288 = vsel %vm278, %v247, -inf
        %v289 = vsel %vm278, %v248, -inf
        %v290 = vsel %vm279, %v249, -inf
        %v291 = vsel %vm279, %v250, -inf
        %v292 = vsel %vm278, %v251, -inf
        %v293 = vsel %vm278, %v252, -inf
        %v294 = vsel %vm279, %v253, -inf
        %v295 = vsel %vm279, %v254, -inf
        %v296 = vsel %vm278, %v255, -inf
        %v297 = vsel %vm278, %v256, -inf
        %v298 = vsel %vm279, %v257, -inf
        %v299 = vsel %vm279, %v258, -inf
        %v300 = vsel %vm278, %v259, -inf
        %v301 = vsel %vm278, %v260, -inf
        %v302 = vsel %vm279, %v261, -inf
        %v303 = vsel %vm279, %v262, -inf
        %v304 = vsel %vm278, %v263, -inf
        %v305 = vsel %vm278, %v264, -inf
        %v306 = vsel %vm279, %v265, -inf
        %v307 = vsel %vm279, %v266, -inf
        %v308 = vsel %vm278, %v267, -inf
        %v309 = vsel %vm278, %v268, -inf
        %v310 = vsel %vm279, %v269, -inf
        %v311 = vsel %vm279, %v270, -inf
        %v312 = vmax.f32 %v280, %v282
        %v313 = vrot.slane %v312, 4
        %v314 = vmax.f32 %v312, %v313
        %v315 = vrot.slane %v314, 2
        %v316 = vmax.f32 %v314, %v315
        %v317 = vrot.slane %v316, 1
        %v318 = vmax.f32 %v316, %v317
        %v319 = vmax.f32 %v281, %v283
        %v320 = vrot.slane %v319, 4
        %v321 = vmax.f32 %v319, %v320
        %v322 = vrot.slane %v321, 2
        %v323 = vmax.f32 %v321, %v322
        %v324 = vrot.slane %v323, 1
        %v325 = vmax.f32 %v323, %v324
        %v326 = vmax.f32 %v284, %v286
        %v327 = vrot.slane %v326, 4
        %v328 = vmax.f32 %v326, %v327
        %v329 = vrot.slane %v328, 2
        %v330 = vmax.f32 %v328, %v329
        %v331 = vrot.slane %v330, 1
        %v332 = vmax.f32 %v330, %v331
        %v333 = vmax.f32 %v285, %v287
        %v334 = vrot.slane %v333, 4
        %v335 = vmax.f32 %v333, %v334
        %v336 = vrot.slane %v335, 2
        %v337 = vmax.f32 %v335, %v336
        %v338 = vrot.slane %v337, 1
        %v339 = vmax.f32 %v337, %v338
        %v340 = vmax.f32 %v288, %v290
        %v341 = vrot.slane %v340, 4
        %v342 = vmax.f32 %v340, %v341
        %v343 = vrot.slane %v342, 2
        %v344 = vmax.f32 %v342, %v343
        %v345 = vrot.slane %v344, 1
        %v346 = vmax.f32 %v344, %v345
        %v347 = vmax.f32 %v289, %v291
        %v348 = vrot.slane %v347, 4
        %v349 = vmax.f32 %v347, %v348
        %v350 = vrot.slane %v349, 2
        %v351 = vmax.f32 %v349, %v350
        %v352 = vrot.slane %v351, 1
        %v353 = vmax.f32 %v351, %v352
        %v354 = vmax.f32 %v292, %v294
        %v355 = vrot.slane %v354, 4
        %v356 = vmax.f32 %v354, %v355
        %v357 = vrot.slane %v356, 2
        %v358 = vmax.f32 %v356, %v357
        %v359 = vrot.slane %v358, 1
        %v360 = vmax.f32 %v358, %v359
        %v361 = vmax.f32 %v293, %v295
        %v362 = vrot.slane %v361, 4
        %v363 = vmax.f32 %v361, %v362
        %v364 = vrot.slane %v363, 2
        %v365 = vmax.f32 %v363, %v364
        %v366 = vrot.slane %v365, 1
        %v367 = vmax.f32 %v365, %v366
        %v368 = vmax.f32 %v296, %v298
        %v369 = vrot.slane %v368, 4
        %v370 = vmax.f32 %v368, %v369
        %v371 = vrot.slane %v370, 2
        %v372 = vmax.f32 %v370, %v371
        %v373 = vrot.slane %v372, 1
        %v374 = vmax.f32 %v372, %v373
        %v375 = vmax.f32 %v297, %v299
        %v376 = vrot.slane %v375, 4
        %v377 = vmax.f32 %v375, %v376
        %v378 = vrot.slane %v377, 2
        %v379 = vmax.f32 %v377, %v378
        %v380 = vrot.slane %v379, 1
        %v381 = vmax.f32 %v379, %v380
        %v382 = vmax.f32 %v300, %v302
        %v383 = vrot.slane %v382, 4
        %v384 = vmax.f32 %v382, %v383
        %v385 = vrot.slane %v384, 2
        %v386 = vmax.f32 %v384, %v385
        %v387 = vrot.slane %v386, 1
        %v388 = vmax.f32 %v386, %v387
        %v389 = vmax.f32 %v301, %v303
        %v390 = vrot.slane %v389, 4
        %v391 = vmax.f32 %v389, %v390
        %v392 = vrot.slane %v391, 2
        %v393 = vmax.f32 %v391, %v392
        %v394 = vrot.slane %v393, 1
        %v395 = vmax.f32 %v393, %v394
        %v396 = vmax.f32 %v304, %v306
        %v397 = vrot.slane %v396, 4
        %v398 = vmax.f32 %v396, %v397
        %v399 = vrot.slane %v398, 2
        %v400 = vmax.f32 %v398, %v399
        %v401 = vrot.slane %v400, 1
        %v402 = vmax.f32 %v400, %v401
        %v403 = vmax.f32 %v305, %v307
        %v404 = vrot.slane %v403, 4
        %v405 = vmax.f32 %v403, %v404
        %v406 = vrot.slane %v405, 2
        %v407 = vmax.f32 %v405, %v406
        %v408 = vrot.slane %v407, 1
        %v409 = vmax.f32 %v407, %v408
        %v410 = vmax.f32 %v308, %v310
        %v411 = vrot.slane %v410, 4
        %v412 = vmax.f32 %v410, %v411
        %v413 = vrot.slane %v412, 2
        %v414 = vmax.f32 %v412, %v413
        %v415 = vrot.slane %v414, 1
        %v416 = vmax.f32 %v414, %v415
        %v417 = vmax.f32 %v309, %v311
        %v418 = vrot.slane %v417, 4
        %v419 = vmax.f32 %v417, %v418
        %v420 = vrot.slane %v419, 2
        %v421 = vmax.f32 %v419, %v420
        %v422 = vrot.slane %v421, 1
        %v423 = vmax.f32 %v421, %v422
        %v424 = vld [vmem:[#allocation2] sm:$0xff]
        %v425 = vld [vmem:[#allocation2 + $0x8] sm:$0xff]
        %vm442 = vcmask 1041409
        %v443 = vsel %vm442, %v332, %v318
        %vm444 = vcmask 1042434
        %v445 = vsel %vm444, %v346, %v443
        %vm446 = vcmask 1043459
        %v447 = vsel %vm446, %v360, %v445
        %vm448 = vcmask 1044484
        %v449 = vsel %vm448, %v374, %v447
        %vm450 = vcmask 1045509
        %v451 = vsel %vm450, %v388, %v449
        %vm452 = vcmask 1046534
        %v453 = vsel %vm452, %v402, %v451
        %vm454 = vcmask 1047559
        %v455 = vsel %vm454, %v416, %v453
        %v456 = vsel %vm442, %v339, %v325
        %v457 = vsel %vm444, %v353, %v456
        %v458 = vsel %vm446, %v367, %v457
        %v459 = vsel %vm448, %v381, %v458
        %v460 = vsel %vm450, %v395, %v459
        %v461 = vsel %vm452, %v409, %v460
        %v462 = vsel %vm454, %v423, %v461
        %v465 = vmax.f32 %v424, %v455
        %v466 = vmax.f32 %v425, %v462
        %467 = vst [vmem:[#allocation2] sm:$0xff] %v465
        %468 = vst [vmem:[#allocation2 + $0x8] sm:$0xff] %v466
        %p469 = scmp.eq.s32.totalorder %s19, 2
        // Predicated region
        $region49: #{tpu_custom_call.1} parent=31 // pred_check
          %p470 = pneg %p469
        $region50: #{tpu_custom_call.1} parent=31 // pred_check_branch
          %472 = sbr.rel (%p470) target = $region52
        $region51: #{tpu_custom_call.1} parent=31 // pred_region
          %s473 = smul.u32 8, 32
          %s474 = smul.u32 %s473, 2
          %s475 = sshll.u32 %s474, 4
          %476 = dma.done [#allocation4], %s475
          %v477 = vld [vmem:[#allocation2] sm:$0xff]
          %v478 = vld [vmem:[#allocation2 + $0x8] sm:$0xff]
          %v479 = vld [vmem:[#allocation3] sm:$0xff]
          %v480 = vld [vmem:[#allocation3 + $0x8] sm:$0xff]
          %v481 = vld [vmem:[#allocation3 + $0x10] sm:$0xff]
          %v482 = vld [vmem:[#allocation3 + $0x18] sm:$0xff]
          %v483 = vld [vmem:[#allocation3 + $0x20] sm:$0xff]
          %v484 = vld [vmem:[#allocation3 + $0x28] sm:$0xff]
          %v485 = vld [vmem:[#allocation3 + $0x30] sm:$0xff]
          %v486 = vld [vmem:[#allocation3 + $0x38] sm:$0xff]
          %v487 = vld [vmem:[#allocation3 + $0x40] sm:$0xff]
          %v488 = vld [vmem:[#allocation3 + $0x48] sm:$0xff]
          %v489 = vld [vmem:[#allocation3 + $0x50] sm:$0xff]
          %v490 = vld [vmem:[#allocation3 + $0x58] sm:$0xff]
          %v491 = vld [vmem:[#allocation3 + $0x60] sm:$0xff]
          %v492 = vld [vmem:[#allocation3 + $0x68] sm:$0xff]
          %v493 = vld [vmem:[#allocation3 + $0x70] sm:$0xff]
          %v494 = vld [vmem:[#allocation3 + $0x78] sm:$0xff]
          %v495 = vld [vmem:[#allocation3 + $0x80] sm:$0xff]
          %v496 = vld [vmem:[#allocation3 + $0x88] sm:$0xff]
          %v497 = vld [vmem:[#allocation3 + $0x90] sm:$0xff]
          %v498 = vld [vmem:[#allocation3 + $0x98] sm:$0xff]
          %v499 = vld [vmem:[#allocation3 + $0xa0] sm:$0xff]
          %v500 = vld [vmem:[#allocation3 + $0xa8] sm:$0xff]
          %v501 = vld [vmem:[#allocation3 + $0xb0] sm:$0xff]
          %v502 = vld [vmem:[#allocation3 + $0xb8] sm:$0xff]
          %v503 = vld [vmem:[#allocation3 + $0xc0] sm:$0xff]
          %v504 = vld [vmem:[#allocation3 + $0xc8] sm:$0xff]
          %v505 = vld [vmem:[#allocation3 + $0xd0] sm:$0xff]
          %v506 = vld [vmem:[#allocation3 + $0xd8] sm:$0xff]
          %v507 = vld [vmem:[#allocation3 + $0xe0] sm:$0xff]
          %v508 = vld [vmem:[#allocation3 + $0xe8] sm:$0xff]
          %v509 = vld [vmem:[#allocation3 + $0xf0] sm:$0xff]
          %v510 = vld [vmem:[#allocation3 + $0xf8] sm:$0xff]
          %v511 = vld [vmem:[#allocation3 + $0x100] sm:$0xff]
          %v512 = vld [vmem:[#allocation3 + $0x108] sm:$0xff]
          %v513 = vld [vmem:[#allocation3 + $0x110] sm:$0xff]
          %v514 = vld [vmem:[#allocation3 + $0x118] sm:$0xff]
          %v515 = vld [vmem:[#allocation3 + $0x120] sm:$0xff]
          %v516 = vld [vmem:[#allocation3 + $0x128] sm:$0xff]
          %v517 = vld [vmem:[#allocation3 + $0x130] sm:$0xff]
          %v518 = vld [vmem:[#allocation3 + $0x138] sm:$0xff]
          %v519 = vld [vmem:[#allocation3 + $0x140] sm:$0xff]
          %v520 = vld [vmem:[#allocation3 + $0x148] sm:$0xff]
          %v521 = vld [vmem:[#allocation3 + $0x150] sm:$0xff]
          %v522 = vld [vmem:[#allocation3 + $0x158] sm:$0xff]
          %v523 = vld [vmem:[#allocation3 + $0x160] sm:$0xff]
          %v524 = vld [vmem:[#allocation3 + $0x168] sm:$0xff]
          %v525 = vld [vmem:[#allocation3 + $0x170] sm:$0xff]
          %v526 = vld [vmem:[#allocation3 + $0x178] sm:$0xff]
          %v527 = vld [vmem:[#allocation3 + $0x180] sm:$0xff]
          %v528 = vld [vmem:[#allocation3 + $0x188] sm:$0xff]
          %v529 = vld [vmem:[#allocation3 + $0x190] sm:$0xff]
          %v530 = vld [vmem:[#allocation3 + $0x198] sm:$0xff]
          %v531 = vld [vmem:[#allocation3 + $0x1a0] sm:$0xff]
          %v532 = vld [vmem:[#allocation3 + $0x1a8] sm:$0xff]
          %v533 = vld [vmem:[#allocation3 + $0x1b0] sm:$0xff]
          %v534 = vld [vmem:[#allocation3 + $0x1b8] sm:$0xff]
          %v535 = vld [vmem:[#allocation3 + $0x1c0] sm:$0xff]
          %v536 = vld [vmem:[#allocation3 + $0x1c8] sm:$0xff]
          %v537 = vld [vmem:[#allocation3 + $0x1d0] sm:$0xff]
          %v538 = vld [vmem:[#allocation3 + $0x1d8] sm:$0xff]
          %v539 = vld [vmem:[#allocation3 + $0x1e0] sm:$0xff]
          %v540 = vld [vmem:[#allocation3 + $0x1e8] sm:$0xff]
          %v541 = vld [vmem:[#allocation3 + $0x1f0] sm:$0xff]
          %v542 = vld [vmem:[#allocation3 + $0x1f8] sm:$0xff]
          %543 = vmatprep.subr.mxu0 %v480
          %544 = vmatpush1.msra.mxu0 %v479
          %545 = vmatprep.subr.mxu0 %v482
          %546 = vmatpush1.msra.mxu0 %v481
          %547 = vmatprep.subr.mxu0 %v484
          %548 = vmatpush1.msra.mxu0 %v483
          %549 = vmatprep.subr.mxu0 %v486
          %550 = vmatpush1.msra.mxu0 %v485
          %551 = vmatprep.subr.mxu0 %v488
          %552 = vmatpush1.msra.mxu0 %v487
          %553 = vmatprep.subr.mxu0 %v490
          %554 = vmatpush1.msra.mxu0 %v489
          %555 = vmatprep.subr.mxu0 %v492
          %556 = vmatpush1.msra.mxu0 %v491
          %557 = vmatprep.subr.mxu0 %v494
          %558 = vmatpush1.msra.mxu0 %v493
          %559 = vmatprep.subr.mxu0 %v496
          %560 = vmatpush1.msra.mxu0 %v495
          %561 = vmatprep.subr.mxu0 %v498
          %562 = vmatpush1.msra.mxu0 %v497
          %563 = vmatprep.subr.mxu0 %v500
          %564 = vmatpush1.msra.mxu0 %v499
          %565 = vmatprep.subr.mxu0 %v502
          %566 = vmatpush1.msra.mxu0 %v501
          %567 = vmatprep.subr.mxu0 %v504
          %568 = vmatpush1.msra.mxu0 %v503
          %569 = vmatprep.subr.mxu0 %v506
          %570 = vmatpush1.msra.mxu0 %v505
          %571 = vmatprep.subr.mxu0 %v508
          %572 = vmatpush1.msra.mxu0 %v507
          %573 = vmatprep.subr.mxu0 %v510
          %574 = vmatpush1.msra.mxu0 %v509
          %575 = vmatprep.subr.mxu0 %v512
          %576 = vmatpush1.msra.mxu0 %v511
          %577 = vmatprep.subr.mxu0 %v514
          %578 = vmatpush1.msra.mxu0 %v513
          %579 = vmatprep.subr.mxu0 %v516
          %580 = vmatpush1.msra.mxu0 %v515
          %581 = vmatprep.subr.mxu0 %v518
          %582 = vmatpush1.msra.mxu0 %v517
          %583 = vmatprep.subr.mxu0 %v520
          %584 = vmatpush1.msra.mxu0 %v519
          %585 = vmatprep.subr.mxu0 %v522
          %586 = vmatpush1.msra.mxu0 %v521
          %587 = vmatprep.subr.mxu0 %v524
          %588 = vmatpush1.msra.mxu0 %v523
          %589 = vmatprep.subr.mxu0 %v526
          %590 = vmatpush1.msra.mxu0 %v525
          %591 = vmatprep.subr.mxu0 %v528
          %592 = vmatpush1.msra.mxu0 %v527
          %593 = vmatprep.subr.mxu0 %v530
          %594 = vmatpush1.msra.mxu0 %v529
          %595 = vmatprep.subr.mxu0 %v532
          %596 = vmatpush1.msra.mxu0 %v531
          %597 = vmatprep.subr.mxu0 %v534
          %598 = vmatpush1.msra.mxu0 %v533
          %599 = vmatprep.subr.mxu0 %v536
          %600 = vmatpush1.msra.mxu0 %v535
          %601 = vmatprep.subr.mxu0 %v538
          %602 = vmatpush1.msra.mxu0 %v537
          %603 = vmatprep.subr.mxu0 %v540
          %604 = vmatpush1.msra.mxu0 %v539
          %605 = vmatprep.subr.mxu0 %v542
          %606 = vmatpush1.msra.mxu0 %v541
          %607 = vmatprep.mubr.f32.mxu0 %v478
          %608 = vmatmul.mubr.f32.gmra.mrb[0].mxu0 %v477
          %v609 = vpop.f32.mrb[0].mxu0
          %v610 = vadd.f32 0.0, %v609
          %v611 = vpop.f32.mrb[0].mxu0
          %v612 = vadd.f32 0.0, %v611
          %613 = vdwg.mxu0
          %v614 = vrot.slane %v610, 4
          %v615 = vadd.f32 %v610, %v614
          %v616 = vrot.slane %v615, 2
          %v617 = vadd.f32 %v615, %v616
          %v618 = vrot.slane %v617, 1
          %v619 = vadd.f32 %v617, %v618
          %v620 = vrot.slane %v612, 4
          %v621 = vadd.f32 %v612, %v620
          %v622 = vrot.slane %v621, 2
          %v623 = vadd.f32 %v621, %v622
          %v624 = vrot.slane %v623, 1
          %v625 = vadd.f32 %v623, %v624
          %v626 = vrcp.pop 8.0
          %v627 = vmul.f32 %v619, %v626
          %v628 = vmul.f32 %v625, %v626
          %v629 = vsub.f32 %v610, %v627
          %v630 = vsub.f32 %v612, %v628
          %v631 = vmul.f32 %v629, %v629
          %v632 = vmul.f32 %v630, %v630
          %v633 = vrot.slane %v631, 4
          %v634 = vadd.f32 %v631, %v633
          %v635 = vrot.slane %v634, 2
          %v636 = vadd.f32 %v634, %v635
          %v637 = vrot.slane %v636, 1
          %v638 = vadd.f32 %v636, %v637
          %v639 = vrot.slane %v632, 4
          %v640 = vadd.f32 %v632, %v639
          %v641 = vrot.slane %v640, 2
          %v642 = vadd.f32 %v640, %v641
          %v643 = vrot.slane %v642, 1
          %v644 = vadd.f32 %v642, %v643
          %v645 = vmul.f32 %v638, %v626
          %v646 = vmul.f32 %v644, %v626
          %v647 = vld [vmem:[%s2] sm:$0x3]
          %v648 = vadd.f32 %v645, 1e-05
          %v649 = vadd.f32 %v646, 1e-05
          %v650 = vrsqrt.pop %v648
          %v651 = vrsqrt.pop %v649
          %v654 = vcombine.low %v650, %v651
          %v656 = vunpack.c.l.s4 1966171168
          %v657 = vunpack.c.0.s8 %v656
          %v658 = vlaneseq
          %v659 = vshrl.u32 %v658, 7
          %v660 = vsub.s32 %v657, %v659
          %v661 = vrot.slane %v654, %v660
          %v663 = vunpack.c.l.s4 1966171168
          %v664 = vunpack.c.0.s8 %v663
          %v665 = vlaneseq
          %v666 = vshrl.u32 %v665, 7
          %v667 = vsub.s32 %v664, %v666
          %v668 = vrot.slane %v661, %v667
          %v670 = vmul.f32 %v647, %v668
          %v672 = vlaneseq
          %v673 = vshrl.u32 %v672, 7
          %v674 = vsub.s32 0, %v673
          %v675 = vrot.slane %v670, %v674
          %v676 = vlaneseq
          %v677 = vshrl.u32 %v676, 7
          %v678 = vsub.s32 1, %v677
          %v679 = vrot.slane %v670, %v678
          %v682 = vmul.f32 %v629, %v675
          %v683 = vmul.f32 %v630, %v679
          %v684 = vld [vmem:[%s3] sm:$0x3]
          %v686 = vlaneseq
          %v687 = vshrl.u32 %v686, 7
          %v688 = vsub.s32 0, %v687
          %v689 = vrot.slane %v684, %v688
          %v690 = vlaneseq
          %v691 = vshrl.u32 %v690, 7
          %v692 = vsub.s32 1, %v691
          %v693 = vrot.slane %v684, %v692
          %v696 = vadd.f32 %v682, %v689
          %v697 = vadd.f32 %v683, %v693
          %v698 = vmax.f32 %v696, 0.0
          %v699 = vmax.f32 %v697, 0.0
          %700 = vst [vmem:[#allocation8] sm:$0xff] %v698
          %701 = vst [vmem:[#allocation8 + $0x8] sm:$0xff] %v699
        $region52: #{tpu_custom_call.1} parent=31 // pred_fallthru
          _
        // Predicated region
        $region53: #{tpu_custom_call.1} parent=31 // pred_check
          %p702 = pneg %p100
        $region54: #{tpu_custom_call.1} parent=31 // pred_check_branch
          %704 = sbr.rel (%p702) target = $region56
        $region55: #{tpu_custom_call.1} parent=31 // pred_region
          %s706 = ssub.s32 256, 256
          %707 = vsyncadd [#allocation7], %s706
          %s709 = sshll.u32 [#allocation8], 4
          %s710 = int_to_ptr.vmem [resolvable:$true] %s709
          %712 = dma.vmem_to_hbm [thread:$0]  %s710, 256, %s4, [#allocation7]
        $region56: #{tpu_custom_call.1} parent=31 // pred_fallthru
          _
        // Predicated region
        $region57: #{tpu_custom_call.1} parent=31 // pred_check
          %p713 = pneg %p100
        $region58: #{tpu_custom_call.1} parent=31 // pred_check_branch
          %715 = sbr.rel (%p713) target = $region60
        $region59: #{tpu_custom_call.1} parent=31 // pred_region
          %716 = dma.done [#allocation7], 256
        $region60: #{tpu_custom_call.1} parent=31 // pred_fallthru
          _
      $region32: #{tpu_custom_call.1} parent=5 // pred_fallthru
        _
      %p717 = scmp.le.s32.totalorder 2, %s14
      // Predicated region
      $region61: #{tpu_custom_call.1} parent=5 // pred_check
        %p718 = pneg %p717
      $region62: #{tpu_custom_call.1} parent=5 // pred_check_branch
        %720 = sbr.rel (%p718) target = $region64
      $region63: #{tpu_custom_call.1} parent=5 // pred_region
        %s721 = ssub.s32 %s14, 2
      $region64: #{tpu_custom_call.1} parent=5 // pred_fallthru
        _
    $region6: #{tpu_custom_call.1} parent=1 // loop_footer
      %s18 = sadd.s32 1, %s14
    $region7: #{tpu_custom_call.1} parent=1 // loop_footer_branch
      %13 = sbr.rel target = $region3
    $region8: #{tpu_custom_call.1} parent=1 // loop_exit
      _
    %722 = vsyncpa [#allocation6], 1
    %s723 = scalar_lea.sflag [#allocation6], 1
    %724 = vsyncpa %s723, 1
    %725 = vsyncpa [#allocation7], 1
    %s726 = scalar_lea.sflag [#allocation7], 1
    %727 = vsyncpa %s726, 1
  %728 = vsyncmov [#allocation4]
  %s729 = vpop.sfrf %728
  %p730 = scmp.eq.s32.totalorder %s729, 0
  %p731 = pneg %p730
  %733 = shalt.err (%p731)

</llo_original>
